<compile_context>
chip_gen: v7x
topology: tpu7x:2x2x1
jax: 0.10.0
libtpu: 0.0.40
codegen_flags: <defaults>
</compile_context>

<pallas_src>
import math

import jax
import jax.numpy as jnp
from jax.experimental import pallas as pl
from jax.experimental.pallas import tpu as pltpu

LANE = 128        # lane width: feature dims padded to a multiple of this
SUBLANE = 8       # sublane width: batch tiles are multiples of this
NEG_FILL = -1e30  # bias fill for padded output columns -> exp() underflows to exactly 0


def _round_up(x, m):
    return ((x + m - 1) // m) * m


def make_mlp_kernel(num_linears: int, use_relu: bool, negative_slope: float = 0.01):
    """Kernel refs: (x, w0, b0, w1, b1, ..., w_{L-1}, b_{L-1}, out).

    Matches the PyTorch Sequential:
      L0: in -> hidden                     (no activation)
      L1..L_h: hidden -> hidden, LeakyReLU (if use_relu)
      L_last: hidden -> out, softmax(dim=1)
    """

    def kernel(*refs):
        x_ref = refs[0]
        out_ref = refs[-1]
        param_refs = refs[1:-1]  # alternating w, b

        h = x_ref[...]
        for i in range(num_linears):
            w = param_refs[2 * i][...]        # (fan_in_pad, fan_out_pad), operand dtype
            b = param_refs[2 * i + 1][...]    # (1, fan_out_pad), float32
            # MXU matmul with f32 accumulation; operands stay in their storage dtype
            # (no per-layer up-cast of weights).
            h = jnp.dot(h.astype(w.dtype), w, preferred_element_type=jnp.float32) + b
            # LeakyReLU only after the hidden (hidden_dim -> hidden_dim) linears,
            # exactly as in the PyTorch module (not after the first nor the last).
            if use_relu and 1 <= i <= num_linears - 2:
                h = jnp.where(h > 0, h, negative_slope * h)

        # Numerically-stable softmax over the padded, lane-dense class axis.
        # Padded output columns carry a -1e30 bias, so exp() == 0 there and the
        # row sum equals the unpadded softmax denominator.
        m = jnp.max(h, axis=1, keepdims=True)
        e = jnp.exp(h - m)
        denom = jnp.sum(e, axis=1, keepdims=True)
        inv = pl.reciprocal(denom, approx=True)   # EUP slot; keeps VALU free
        out_ref[...] = (e * inv).astype(out_ref.dtype)

    return kernel


def mlp_cal_w_forward(x, params, use_relu: bool = True,
                      operand_dtype=jnp.float32, tile_n: int = 512):
    """Runs the MLPCalW forward pass as a single batch-tiled Pallas kernel.

    x: (N, in_channels) float32
    params: flat list [w0, b0, w1, b1, ...], wi of shape (fan_in, fan_out), bi (fan_out,)
    operand_dtype: dtype for x/weights at the matmul (bf16 recommended on v6e/v7x);
                   accumulation and elementwise math stay f32.
    Returns softmax probabilities of shape (N, out_channels), float32.
    """
    num_linears = len(params) // 2
    n, in_dim = x.shape
    out_dim = params[-2].shape[1]

    # Feature-dim chain and its 128-lane padding (done once, outside the kernel).
    dims = [in_dim] + [params[2 * i].shape[1] for i in range(num_linears)]
    pdims = [_round_up(d, LANE) for d in dims]

    # Batch tiling: TILE_N rows per grid step (multiple of 8), batch padded to a
    # tile multiple. 512 rows keeps the per-step working set tiny (< 1 MiB) and
    # well under the 32 MiB scoped VMEM default on every chip incl. v7x.
    tile_n = max(SUBLANE, min(tile_n, _round_up(n, SUBLANE)))
    n_pad = _round_up(n, tile_n)

    x_p = jnp.zeros((n_pad, pdims[0]), operand_dtype).at[:n, :in_dim].set(
        x.astype(operand_dtype))

    args = [x_p]
    in_specs = [pl.BlockSpec((tile_n, pdims[0]), lambda i: (i, 0))]
    for li in range(num_linears):
        w = params[2 * li]
        b = params[2 * li + 1]
        fi, fo = w.shape
        pin, pout = pdims[li], pdims[li + 1]
        w_p = jnp.zeros((pin, pout), operand_dtype).at[:fi, :fo].set(
            w.astype(operand_dtype))
        bias_fill = NEG_FILL if li == num_linears - 1 else 0.0
        b_p = jnp.full((1, pout), bias_fill, jnp.float32).at[0, :fo].set(
            b.astype(jnp.float32))
        args += [w_p, b_p]
        # Constant index_map -> weights/biases stay VMEM-resident across grid steps.
        in_specs += [pl.BlockSpec((pin, pout), lambda i: (0, 0)),
                     pl.BlockSpec((1, pout), lambda i: (0, 0))]

    out_pad = pdims[-1]
    grid = (n_pad // tile_n,)

    flops = 2 * n_pad * sum(pdims[i] * pdims[i + 1] for i in range(num_linears))
    bytes_accessed = sum(int(a.size) * a.dtype.itemsize for a in args) \
        + n_pad * out_pad * 4
    cost = pl.CostEstimate(flops=flops,
                           transcendentals=n_pad * out_pad,
                           bytes_accessed=int(bytes_accessed))

    kernel = make_mlp_kernel(num_linears, use_relu)
    out_full = pl.pallas_call(
        kernel,
        out_shape=jax.ShapeDtypeStruct((n_pad, out_pad), jnp.float32),
        grid=grid,
        in_specs=in_specs,
        out_specs=pl.BlockSpec((tile_n, out_pad), lambda i: (i, 0)),
        compiler_params=pltpu.CompilerParams(
            dimension_semantics=("parallel",),        # shard batch tiles across TCs (v7x)
            vmem_limit_bytes=32 * 1024 * 1024),
        cost_estimate=cost,
    )(*args)

    # Strip batch/lane padding in the wrapper.
    return out_full[:n, :out_dim]


def init_mlp_params(key, in_channels, out_channels, hidden_dim, hidden_layers):
    """Deterministic init mimicking PyTorch nn.Linear default U(-1/sqrt(fan_in), +)."""
    dims = []
    if hidden_layers == 0:
        dims.append((in_channels, out_channels))
    else:
        dims.append((in_channels, hidden_dim))
        for _ in range(hidden_layers):
            dims.append((hidden_dim, hidden_dim))
        dims.append((hidden_dim, out_channels))

    params = []
    for fan_in, fan_out in dims:
        key, kw, kb = jax.random.split(key, 3)
        bound = 1.0 / math.sqrt(fan_in)
        params.append(jax.random.uniform(kw, (fan_in, fan_out), jnp.float32, -bound, bound))
        params.append(jax.random.uniform(kb, (fan_out,), jnp.float32, -bound, bound))
    return params


def reference_forward(x, params, use_relu=True, negative_slope=0.01):
    """Pure-JAX reference matching the PyTorch module."""
    num_linears = len(params) // 2
    h = x
    for i in range(num_linears):
        h = h @ params[2 * i] + params[2 * i + 1]
        if use_relu and 1 <= i <= num_linears - 2:
            h = jnp.where(h > 0, h, negative_slope * h)
    return jax.nn.softmax(h, axis=1)


if __name__ == "__main__":
    key = jax.random.PRNGKey(0)

    # Module config: in_channels=4 predictors, out_channels=4, hidden_dim=32, 1 hidden layer.
    in_channels, out_channels, hidden_dim, hidden_layers = 4, 4, 32, 1
    batch = 8

    key, kx = jax.random.split(key)
    x = jax.random.uniform(kx, (batch, in_channels), jnp.float32)
    params = init_mlp_params(key, in_channels, out_channels, hidden_dim, hidden_layers)

    ref = reference_forward(x, params, use_relu=True)

    # f32 operands (only the approx EUP reciprocal + padding differ from the reference).
    out_f32 = jax.block_until_ready(
        mlp_cal_w_forward(x, params, use_relu=True, operand_dtype=jnp.float32))
    assert out_f32.shape == (batch, out_channels)
    assert jnp.allclose(out_f32, ref, atol=5e-3, rtol=5e-3), "f32 mismatch vs reference"
    assert jnp.allclose(jnp.sum(out_f32, axis=1), 1.0, atol=1e-2), "rows must sum to 1"

    # bf16 operands with f32 accumulation (v6e/v7x bandwidth-saving path).
    out_bf16 = jax.block_until_ready(
        mlp_cal_w_forward(x, params, use_relu=True, operand_dtype=jnp.bfloat16))
    assert out_bf16.shape == (batch, out_channels)
    assert jnp.allclose(out_bf16, ref, atol=5e-2, rtol=5e-2), "bf16 mismatch vs reference"

    print("KERNEL_OK")
</pallas_src>

<mosaic_0001>
module attributes {stable_mosaic.version = 11 : i64} {
  func.func @kernel(%arg0: i32, %arg1: memref<8x128xf32, #tpu.memory_space<vmem>>, %arg2: memref<128x128xf32, #tpu.memory_space<vmem>>, %arg3: memref<1x128xf32, #tpu.memory_space<vmem>>, %arg4: memref<128x128xf32, #tpu.memory_space<vmem>>, %arg5: memref<1x128xf32, #tpu.memory_space<vmem>>, %arg6: memref<128x128xf32, #tpu.memory_space<vmem>>, %arg7: memref<1x128xf32, #tpu.memory_space<vmem>>, %arg8: memref<8x128xf32, #tpu.memory_space<vmem>>) attributes {dimension_semantics = [#tpu.dimension_semantics<parallel>], iteration_bounds = array<i64: 1>, scalar_prefetch = 0 : i64, scratch_operands = 0 : i64, tpu.core_type = #tpu.core_type<tc>, window_params = [{transform_indices = @transform_0, window_bounds = array<i64: 8, 128>}, {pipeline_mode = #tpu.pipeline_mode<synchronous>, transform_indices = @transform_1, window_bounds = array<i64: 128, 128>}, {pipeline_mode = #tpu.pipeline_mode<synchronous>, transform_indices = @transform_2, window_bounds = array<i64: 1, 128>}, {pipeline_mode = #tpu.pipeline_mode<synchronous>, transform_indices = @transform_3, window_bounds = array<i64: 128, 128>}, {pipeline_mode = #tpu.pipeline_mode<synchronous>, transform_indices = @transform_4, window_bounds = array<i64: 1, 128>}, {pipeline_mode = #tpu.pipeline_mode<synchronous>, transform_indices = @transform_5, window_bounds = array<i64: 128, 128>}, {pipeline_mode = #tpu.pipeline_mode<synchronous>, transform_indices = @transform_6, window_bounds = array<i64: 1, 128>}, {transform_indices = @transform_7, window_bounds = array<i64: 8, 128>}]} {
    %c0 = arith.constant 0 : index
    %c0_0 = arith.constant 0 : index
    %0 = vector.load %arg1[%c0, %c0_0] : memref<8x128xf32, #tpu.memory_space<vmem>>, vector<8x128xf32>
    %c0_1 = arith.constant 0 : index
    %c0_2 = arith.constant 0 : index
    %1 = vector.load %arg2[%c0_1, %c0_2] : memref<128x128xf32, #tpu.memory_space<vmem>>, vector<128x128xf32>
    %c0_3 = arith.constant 0 : index
    %c0_4 = arith.constant 0 : index
    %2 = vector.load %arg3[%c0_3, %c0_4] : memref<1x128xf32, #tpu.memory_space<vmem>>, vector<1x128xf32>
    %cst = arith.constant dense<0.000000e+00> : vector<8x128xf32>
    %3 = tpu.matmul %0, %1, %cst {dimension_numbers = #tpu.dot_dimension_numbers<[1], [0], [0], [1], [0, 0, 1, 1], [], []>} : vector<8x128xf32>, vector<128x128xf32>, vector<8x128xf32> -> vector<8x128xf32>
    %4 = vector.broadcast %2 : vector<1x128xf32> to vector<8x128xf32>
    %5 = arith.addf %3, %4 : vector<8x128xf32>
    %c0_5 = arith.constant 0 : index
    %c0_6 = arith.constant 0 : index
    %6 = vector.load %arg4[%c0_5, %c0_6] : memref<128x128xf32, #tpu.memory_space<vmem>>, vector<128x128xf32>
    %c0_7 = arith.constant 0 : index
    %c0_8 = arith.constant 0 : index
    %7 = vector.load %arg5[%c0_7, %c0_8] : memref<1x128xf32, #tpu.memory_space<vmem>>, vector<1x128xf32>
    %cst_9 = arith.constant dense<0.000000e+00> : vector<8x128xf32>
    %8 = tpu.matmul %5, %6, %cst_9 {dimension_numbers = #tpu.dot_dimension_numbers<[1], [0], [0], [1], [0, 0, 1, 1], [], []>} : vector<8x128xf32>, vector<128x128xf32>, vector<8x128xf32> -> vector<8x128xf32>
    %9 = vector.broadcast %7 : vector<1x128xf32> to vector<8x128xf32>
    %10 = arith.addf %8, %9 : vector<8x128xf32>
    %cst_10 = arith.constant 0.000000e+00 : f32
    %11 = vector.broadcast %cst_10 : f32 to vector<8x128xf32>
    %12 = arith.cmpf ogt, %10, %11 : vector<8x128xf32>
    %cst_11 = arith.constant 0.00999999977 : f32
    %13 = vector.broadcast %cst_11 : f32 to vector<8x128xf32>
    %14 = arith.mulf %13, %10 : vector<8x128xf32>
    %15 = arith.select %12, %10, %14 : vector<8x128xi1>, vector<8x128xf32>
    %c0_12 = arith.constant 0 : index
    %c0_13 = arith.constant 0 : index
    %16 = vector.load %arg6[%c0_12, %c0_13] : memref<128x128xf32, #tpu.memory_space<vmem>>, vector<128x128xf32>
    %c0_14 = arith.constant 0 : index
    %c0_15 = arith.constant 0 : index
    %17 = vector.load %arg7[%c0_14, %c0_15] : memref<1x128xf32, #tpu.memory_space<vmem>>, vector<1x128xf32>
    %cst_16 = arith.constant dense<0.000000e+00> : vector<8x128xf32>
    %18 = tpu.matmul %15, %16, %cst_16 {dimension_numbers = #tpu.dot_dimension_numbers<[1], [0], [0], [1], [0, 0, 1, 1], [], []>} : vector<8x128xf32>, vector<128x128xf32>, vector<8x128xf32> -> vector<8x128xf32>
    %19 = vector.broadcast %17 : vector<1x128xf32> to vector<8x128xf32>
    %20 = arith.addf %18, %19 : vector<8x128xf32>
    %cst_17 = arith.constant dense<0xFF800000> : vector<8xf32>
    %21 = vector.multi_reduction <maximumf>, %20, %cst_17 [1] : vector<8x128xf32> to vector<8xf32>
    %22 = vector.shape_cast %21 : vector<8xf32> to vector<8x1xf32>
    %23 = vector.broadcast %22 : vector<8x1xf32> to vector<8x128xf32>
    %24 = arith.subf %20, %23 : vector<8x128xf32>
    %25 = math.exp %24 : vector<8x128xf32>
    %cst_18 = arith.constant dense<0.000000e+00> : vector<8xf32>
    %26 = vector.multi_reduction <add>, %25, %cst_18 [1] : vector<8x128xf32> to vector<8xf32>
    %27 = vector.shape_cast %26 : vector<8xf32> to vector<8x1xf32>
    %28 = tpu.reciprocal %27 {approx = true} : vector<8x1xf32> -> vector<8x1xf32>
    %29 = vector.broadcast %28 : vector<8x1xf32> to vector<8x128xf32>
    %30 = arith.mulf %25, %29 : vector<8x128xf32>
    %c0_19 = arith.constant 0 : index
    %c0_20 = arith.constant 0 : index
    %31 = vector.load %arg8[%c0_19, %c0_20] : memref<8x128xf32, #tpu.memory_space<vmem>>, vector<8x128xf32>
    tpu.vector_store %arg8[%c0_19, %c0_20], %30 {strides = array<i32>} : memref<8x128xf32, #tpu.memory_space<vmem>>, vector<8x128xf32>,
    return
  }
  func.func @transform_0(%arg0: i32) -> (i32, i32) {
    %c0_i32 = arith.constant 0 : i32
    %c0_i32_0 = arith.constant 0 : i32
    return %arg0, %c0_i32 : i32, i32
  }
  func.func @transform_1(%arg0: i32) -> (i32, i32) {
    %c0_i32 = arith.constant 0 : i32
    %c0_i32_0 = arith.constant 0 : i32
    %c0_i32_1 = arith.constant 0 : i32
    return %c0_i32, %c0_i32_0 : i32, i32
  }
  func.func @transform_2(%arg0: i32) -> (i32, i32) {
    %c0_i32 = arith.constant 0 : i32
    %c0_i32_0 = arith.constant 0 : i32
    %c0_i32_1 = arith.constant 0 : i32
    return %c0_i32, %c0_i32_0 : i32, i32
  }
  func.func @transform_3(%arg0: i32) -> (i32, i32) {
    %c0_i32 = arith.constant 0 : i32
    %c0_i32_0 = arith.constant 0 : i32
    %c0_i32_1 = arith.constant 0 : i32
    return %c0_i32, %c0_i32_0 : i32, i32
  }
  func.func @transform_4(%arg0: i32) -> (i32, i32) {
    %c0_i32 = arith.constant 0 : i32
    %c0_i32_0 = arith.constant 0 : i32
    %c0_i32_1 = arith.constant 0 : i32
    return %c0_i32, %c0_i32_0 : i32, i32
  }
  func.func @transform_5(%arg0: i32) -> (i32, i32) {
    %c0_i32 = arith.constant 0 : i32
    %c0_i32_0 = arith.constant 0 : i32
    %c0_i32_1 = arith.constant 0 : i32
    return %c0_i32, %c0_i32_0 : i32, i32
  }
  func.func @transform_6(%arg0: i32) -> (i32, i32) {
    %c0_i32 = arith.constant 0 : i32
    %c0_i32_0 = arith.constant 0 : i32
    %c0_i32_1 = arith.constant 0 : i32
    return %c0_i32, %c0_i32_0 : i32, i32
  }
  func.func @transform_7(%arg0: i32) -> (i32, i32) {
    %c0_i32 = arith.constant 0 : i32
    %c0_i32_0 = arith.constant 0 : i32
    return %arg0, %c0_i32 : i32, i32
  }
}

</mosaic_0001>

<llo_original>
// kernel: tpu_custom_call.1
$region0: #{tpu_custom_call.1}
  #allocation0 [shape = 'u32[]', space=smem, size = 0x4, offset = 0x4, fixed_abs, tag = 'smem constant byte address 0x4 - core index']
  #allocation1 [shape = 'u32[144,128]{1,0:T(1,128)}', space=vmem, size = 0x12000, scoped, tag = 'internal scratch']
  %s0 = inlined_call_operand.hbm [shape: f32[8,128], index: 0, kind: input, shape index: {}]
  %s1 = inlined_call_operand.hbm [shape: f32[128,128], index: 1, kind: input, shape index: {}]
  %s2 = inlined_call_operand.vmem [shape: f32[1,128], index: 2, kind: input, shape index: {}]
  %s3 = inlined_call_operand.hbm [shape: f32[128,128], index: 3, kind: input, shape index: {}]
  %s4 = inlined_call_operand.vmem [shape: f32[1,128], index: 4, kind: input, shape index: {}]
  %s5 = inlined_call_operand.hbm [shape: f32[128,128], index: 5, kind: input, shape index: {}]
  %s6 = inlined_call_operand.vmem [shape: f32[1,128], index: 6, kind: input, shape index: {}]
  %s7 = inlined_call_operand.hbm [shape: f32[8,128], index: 7, kind: output, shape index: {}]
  %s8 = sld [smem:[#allocation0]]
  $region54: #{tpu_custom_call.1} parent=0
    _
  %s10 = ssub.s32 1, %s8
  %s11 = scalar_select 0, %s10, %s8
  $region1: #{tpu_custom_call.1} parent=0
    #allocation2 [shape = 'u8[4096]{0}', space=vmem, size = 0x1000, scoped, tag = 'input window, operand 0, single buffered']
    #allocation3 [shape = 's32[1]{0}', space=sflag, size = 0x4, scoped, tag = 'scoped memory for tpu_custom_call.1']
    #allocation4 [shape = 's32[1]{0}', space=sflag, size = 0x4, scoped, tag = 'scoped memory for tpu_custom_call.1']
    #allocation5 [shape = 'u8[65536]{0}', space=vmem, size = 0x10000, scoped, tag = 'input window, operand 1, single buffered']
    #allocation6 [shape = 's32[1]{0}', space=sflag, size = 0x4, scoped, tag = 'scoped memory for tpu_custom_call.1']
    #allocation7 [shape = 'u8[65536]{0}', space=vmem, size = 0x10000, scoped, tag = 'input window, operand 3, single buffered']
    #allocation8 [shape = 'u8[65536]{0}', space=vmem, size = 0x10000, scoped, tag = 'input window, operand 5, single buffered']
    #allocation9 [shape = 's32[1]{0}', space=sflag, size = 0x4, scoped, tag = 'scoped memory for tpu_custom_call.1']
    #allocation10 [shape = 'u8[4096]{0}', space=vmem, size = 0x1000, scoped, tag = 'output window, operand 0, single buffered']
    %12 = vsyncpa [#allocation3], 0
    %13 = vsyncpa [#allocation6], 0
    %14 = vsyncpa [#allocation9], 0
    %15 = vsyncpa [#allocation4], 0
    // Predicated region
    $region2: #{tpu_custom_call.1} parent=1 // pred_check
      _
    $region3: #{tpu_custom_call.1} parent=1 // pred_check_branch
      %17 = sbr.rel (0) target = $region5
    $region4: #{tpu_custom_call.1} parent=1 // pred_region
      %s19 = ssub.s32 128, 128
      %20 = vsyncadd [#allocation3], %s19
      %s22 = sshll.u32 [#allocation2], 4
      %s23 = int_to_ptr.vmem [resolvable:$true] %s22
      %25 = dma.hbm_to_vmem [thread:$0]  %s0, 128, %s23, [#allocation3]
    $region5: #{tpu_custom_call.1} parent=1 // pred_fallthru
      _
    // Predicated region
    $region6: #{tpu_custom_call.1} parent=1 // pred_check
      _
    $region7: #{tpu_custom_call.1} parent=1 // pred_check_branch
      %27 = sbr.rel (0) target = $region9
    $region8: #{tpu_custom_call.1} parent=1 // pred_region
      %s29 = ssub.s32 2048, 2048
      %30 = vsyncadd [#allocation6], %s29
      %s31 = sshll.u32 [#allocation5], 4
      %s32 = int_to_ptr.vmem [resolvable:$true] %s31
      %37 = dma.hbm_to_vmem [thread:$0]  %s1, 2048, %s32, [#allocation6], 128, 128, 8
    $region9: #{tpu_custom_call.1} parent=1 // pred_fallthru
      _
    // Predicated region
    $region10: #{tpu_custom_call.1} parent=1 // pred_check
      _
    $region11: #{tpu_custom_call.1} parent=1 // pred_check_branch
      %39 = sbr.rel (0) target = $region13
    $region12: #{tpu_custom_call.1} parent=1 // pred_region
      _
    $region13: #{tpu_custom_call.1} parent=1 // pred_fallthru
      _
    // Predicated region
    $region14: #{tpu_custom_call.1} parent=1 // pred_check
      _
    $region15: #{tpu_custom_call.1} parent=1 // pred_check_branch
      %41 = sbr.rel (0) target = $region17
    $region16: #{tpu_custom_call.1} parent=1 // pred_region
      %s43 = ssub.s32 2048, 2048
      %44 = vsyncadd [#allocation6], %s43
      %s45 = sshll.u32 [#allocation7], 4
      %s46 = int_to_ptr.vmem [resolvable:$true] %s45
      %51 = dma.hbm_to_vmem [thread:$0]  %s3, 2048, %s46, [#allocation6], 128, 128, 8
    $region17: #{tpu_custom_call.1} parent=1 // pred_fallthru
      _
    // Predicated region
    $region18: #{tpu_custom_call.1} parent=1 // pred_check
      _
    $region19: #{tpu_custom_call.1} parent=1 // pred_check_branch
      %53 = sbr.rel (0) target = $region21
    $region20: #{tpu_custom_call.1} parent=1 // pred_region
      _
    $region21: #{tpu_custom_call.1} parent=1 // pred_fallthru
      _
    // Predicated region
    $region22: #{tpu_custom_call.1} parent=1 // pred_check
      _
    $region23: #{tpu_custom_call.1} parent=1 // pred_check_branch
      %55 = sbr.rel (0) target = $region25
    $region24: #{tpu_custom_call.1} parent=1 // pred_region
      %s57 = ssub.s32 2048, 2048
      %58 = vsyncadd [#allocation9], %s57
      %s59 = sshll.u32 [#allocation8], 4
      %s60 = int_to_ptr.vmem [resolvable:$true] %s59
      %65 = dma.hbm_to_vmem [thread:$0]  %s5, 2048, %s60, [#allocation9], 128, 128, 8
    $region25: #{tpu_custom_call.1} parent=1 // pred_fallthru
      _
    // Predicated region
    $region26: #{tpu_custom_call.1} parent=1 // pred_check
      _
    $region27: #{tpu_custom_call.1} parent=1 // pred_check_branch
      %67 = sbr.rel (0) target = $region29
    $region28: #{tpu_custom_call.1} parent=1 // pred_region
      _
    $region29: #{tpu_custom_call.1} parent=1 // pred_fallthru
      _
    // Predicated region
    $region30: #{tpu_custom_call.1} parent=1 // pred_check
      _
    $region31: #{tpu_custom_call.1} parent=1 // pred_check_branch
      %69 = sbr.rel (0) target = $region33
    $region32: #{tpu_custom_call.1} parent=1 // pred_region
      %70 = dma.done [#allocation3], 128
    $region33: #{tpu_custom_call.1} parent=1 // pred_fallthru
      _
    // Predicated region
    $region34: #{tpu_custom_call.1} parent=1 // pred_check
      _
    $region35: #{tpu_custom_call.1} parent=1 // pred_check_branch
      %72 = sbr.rel (0) target = $region37
    $region36: #{tpu_custom_call.1} parent=1 // pred_region
      %73 = dma.done [#allocation6], 2048
    $region37: #{tpu_custom_call.1} parent=1 // pred_fallthru
      _
    // Predicated region
    $region38: #{tpu_custom_call.1} parent=1 // pred_check
      _
    $region39: #{tpu_custom_call.1} parent=1 // pred_check_branch
      %75 = sbr.rel (0) target = $region41
    $region40: #{tpu_custom_call.1} parent=1 // pred_region
      %76 = dma.done [#allocation6], 2048
    $region41: #{tpu_custom_call.1} parent=1 // pred_fallthru
      _
    // Predicated region
    $region42: #{tpu_custom_call.1} parent=1 // pred_check
      _
    $region43: #{tpu_custom_call.1} parent=1 // pred_check_branch
      %78 = sbr.rel (0) target = $region45
    $region44: #{tpu_custom_call.1} parent=1 // pred_region
      %79 = dma.done [#allocation9], 2048
    $region45: #{tpu_custom_call.1} parent=1 // pred_fallthru
      _
    %v80 = vld [vmem:[#allocation2] sm:$0xff]
    %v81 = vld [vmem:[#allocation5] sm:$0xff]
    %v82 = vld [vmem:[#allocation5 + $0x8] sm:$0xff]
    %v83 = vld [vmem:[#allocation5 + $0x10] sm:$0xff]
    %v84 = vld [vmem:[#allocation5 + $0x18] sm:$0xff]
    %v85 = vld [vmem:[#allocation5 + $0x20] sm:$0xff]
    %v86 = vld [vmem:[#allocation5 + $0x28] sm:$0xff]
    %v87 = vld [vmem:[#allocation5 + $0x30] sm:$0xff]
    %v88 = vld [vmem:[#allocation5 + $0x38] sm:$0xff]
    %v89 = vld [vmem:[#allocation5 + $0x40] sm:$0xff]
    %v90 = vld [vmem:[#allocation5 + $0x48] sm:$0xff]
    %v91 = vld [vmem:[#allocation5 + $0x50] sm:$0xff]
    %v92 = vld [vmem:[#allocation5 + $0x58] sm:$0xff]
    %v93 = vld [vmem:[#allocation5 + $0x60] sm:$0xff]
    %v94 = vld [vmem:[#allocation5 + $0x68] sm:$0xff]
    %v95 = vld [vmem:[#allocation5 + $0x70] sm:$0xff]
    %v96 = vld [vmem:[#allocation5 + $0x78] sm:$0xff]
    %v97 = vld [vmem:[%s2] sm:$0x1]
    %v99 = vlaneseq
    %v100 = vshrl.u32 %v99, 7
    %v101 = vsub.s32 0, %v100
    %v102 = vrot.slane %v97, %v101
    %104 = vmatprep.subr.mxu0 0.0
    %105 = vmatpush1.msra.mxu0 %v81
    %106 = vmatprep.subr.mxu0 0.0
    %107 = vmatpush1.msra.mxu0 %v82
    %108 = vmatprep.subr.mxu0 0.0
    %109 = vmatpush1.msra.mxu0 %v83
    %110 = vmatprep.subr.mxu0 0.0
    %111 = vmatpush1.msra.mxu0 %v84
    %112 = vmatprep.subr.mxu0 0.0
    %113 = vmatpush1.msra.mxu0 %v85
    %114 = vmatprep.subr.mxu0 0.0
    %115 = vmatpush1.msra.mxu0 %v86
    %116 = vmatprep.subr.mxu0 0.0
    %117 = vmatpush1.msra.mxu0 %v87
    %118 = vmatprep.subr.mxu0 0.0
    %119 = vmatpush1.msra.mxu0 %v88
    %120 = vmatprep.subr.mxu0 0.0
    %121 = vmatpush1.msra.mxu0 %v89
    %122 = vmatprep.subr.mxu0 0.0
    %123 = vmatpush1.msra.mxu0 %v90
    %124 = vmatprep.subr.mxu0 0.0
    %125 = vmatpush1.msra.mxu0 %v91
    %126 = vmatprep.subr.mxu0 0.0
    %127 = vmatpush1.msra.mxu0 %v92
    %128 = vmatprep.subr.mxu0 0.0
    %129 = vmatpush1.msra.mxu0 %v93
    %130 = vmatprep.subr.mxu0 0.0
    %131 = vmatpush1.msra.mxu0 %v94
    %132 = vmatprep.subr.mxu0 0.0
    %133 = vmatpush1.msra.mxu0 %v95
    %134 = vmatprep.subr.mxu0 0.0
    %135 = vmatpush1.msra.mxu0 %v96
    %136 = vmatprep.subr.mxu0 0.0
    %137 = vmatpush1.msra.mxu0 0.0
    %138 = vmatprep.subr.mxu0 0.0
    %139 = vmatpush1.msra.mxu0 0.0
    %140 = vmatprep.subr.mxu0 0.0
    %141 = vmatpush1.msra.mxu0 0.0
    %142 = vmatprep.subr.mxu0 0.0
    %143 = vmatpush1.msra.mxu0 0.0
    %144 = vmatprep.subr.mxu0 0.0
    %145 = vmatpush1.msra.mxu0 0.0
    %146 = vmatprep.subr.mxu0 0.0
    %147 = vmatpush1.msra.mxu0 0.0
    %148 = vmatprep.subr.mxu0 0.0
    %149 = vmatpush1.msra.mxu0 0.0
    %150 = vmatprep.subr.mxu0 0.0
    %151 = vmatpush1.msra.mxu0 0.0
    %152 = vmatprep.subr.mxu0 0.0
    %153 = vmatpush1.msra.mxu0 0.0
    %154 = vmatprep.subr.mxu0 0.0
    %155 = vmatpush1.msra.mxu0 0.0
    %156 = vmatprep.subr.mxu0 0.0
    %157 = vmatpush1.msra.mxu0 0.0
    %158 = vmatprep.subr.mxu0 0.0
    %159 = vmatpush1.msra.mxu0 0.0
    %160 = vmatprep.subr.mxu0 0.0
    %161 = vmatpush1.msra.mxu0 0.0
    %162 = vmatprep.subr.mxu0 0.0
    %163 = vmatpush1.msra.mxu0 0.0
    %164 = vmatprep.subr.mxu0 0.0
    %165 = vmatpush1.msra.mxu0 0.0
    %166 = vmatprep.subr.mxu0 0.0
    %167 = vmatpush1.msra.mxu0 0.0
    %168 = vmatprep.mubr.f32.mxu0 0.0
    %169 = vmatmul.mubr.f32.gmra.mrb[0].mxu0 %v80
    %v170 = vpop.f32.mrb[0].mxu0
    %v171 = vadd.f32 %v102, %v170
    %v172 = vpop.f32.mrb[0].mxu0
    %173 = vdwg.mxu0
    %v174 = vld [vmem:[#allocation7] sm:$0xff]
    %v175 = vld [vmem:[#allocation7 + $0x8] sm:$0xff]
    %v176 = vld [vmem:[#allocation7 + $0x10] sm:$0xff]
    %v177 = vld [vmem:[#allocation7 + $0x18] sm:$0xff]
    %v178 = vld [vmem:[#allocation7 + $0x20] sm:$0xff]
    %v179 = vld [vmem:[#allocation7 + $0x28] sm:$0xff]
    %v180 = vld [vmem:[#allocation7 + $0x30] sm:$0xff]
    %v181 = vld [vmem:[#allocation7 + $0x38] sm:$0xff]
    %v182 = vld [vmem:[#allocation7 + $0x40] sm:$0xff]
    %v183 = vld [vmem:[#allocation7 + $0x48] sm:$0xff]
    %v184 = vld [vmem:[#allocation7 + $0x50] sm:$0xff]
    %v185 = vld [vmem:[#allocation7 + $0x58] sm:$0xff]
    %v186 = vld [vmem:[#allocation7 + $0x60] sm:$0xff]
    %v187 = vld [vmem:[#allocation7 + $0x68] sm:$0xff]
    %v188 = vld [vmem:[#allocation7 + $0x70] sm:$0xff]
    %v189 = vld [vmem:[#allocation7 + $0x78] sm:$0xff]
    %v190 = vld [vmem:[%s4] sm:$0x1]
    %v192 = vlaneseq
    %v193 = vshrl.u32 %v192, 7
    %v194 = vsub.s32 0, %v193
    %v195 = vrot.slane %v190, %v194
    %197 = vmatprep.subr.mxu0 0.0
    %198 = vmatpush1.msra.mxu0 %v174
    %199 = vmatprep.subr.mxu0 0.0
    %200 = vmatpush1.msra.mxu0 %v175
    %201 = vmatprep.subr.mxu0 0.0
    %202 = vmatpush1.msra.mxu0 %v176
    %203 = vmatprep.subr.mxu0 0.0
    %204 = vmatpush1.msra.mxu0 %v177
    %205 = vmatprep.subr.mxu0 0.0
    %206 = vmatpush1.msra.mxu0 %v178
    %207 = vmatprep.subr.mxu0 0.0
    %208 = vmatpush1.msra.mxu0 %v179
    %209 = vmatprep.subr.mxu0 0.0
    %210 = vmatpush1.msra.mxu0 %v180
    %211 = vmatprep.subr.mxu0 0.0
    %212 = vmatpush1.msra.mxu0 %v181
    %213 = vmatprep.subr.mxu0 0.0
    %214 = vmatpush1.msra.mxu0 %v182
    %215 = vmatprep.subr.mxu0 0.0
    %216 = vmatpush1.msra.mxu0 %v183
    %217 = vmatprep.subr.mxu0 0.0
    %218 = vmatpush1.msra.mxu0 %v184
    %219 = vmatprep.subr.mxu0 0.0
    %220 = vmatpush1.msra.mxu0 %v185
    %221 = vmatprep.subr.mxu0 0.0
    %222 = vmatpush1.msra.mxu0 %v186
    %223 = vmatprep.subr.mxu0 0.0
    %224 = vmatpush1.msra.mxu0 %v187
    %225 = vmatprep.subr.mxu0 0.0
    %226 = vmatpush1.msra.mxu0 %v188
    %227 = vmatprep.subr.mxu0 0.0
    %228 = vmatpush1.msra.mxu0 %v189
    %229 = vmatprep.subr.mxu0 0.0
    %230 = vmatpush1.msra.mxu0 0.0
    %231 = vmatprep.subr.mxu0 0.0
    %232 = vmatpush1.msra.mxu0 0.0
    %233 = vmatprep.subr.mxu0 0.0
    %234 = vmatpush1.msra.mxu0 0.0
    %235 = vmatprep.subr.mxu0 0.0
    %236 = vmatpush1.msra.mxu0 0.0
    %237 = vmatprep.subr.mxu0 0.0
    %238 = vmatpush1.msra.mxu0 0.0
    %239 = vmatprep.subr.mxu0 0.0
    %240 = vmatpush1.msra.mxu0 0.0
    %241 = vmatprep.subr.mxu0 0.0
    %242 = vmatpush1.msra.mxu0 0.0
    %243 = vmatprep.subr.mxu0 0.0
    %244 = vmatpush1.msra.mxu0 0.0
    %245 = vmatprep.subr.mxu0 0.0
    %246 = vmatpush1.msra.mxu0 0.0
    %247 = vmatprep.subr.mxu0 0.0
    %248 = vmatpush1.msra.mxu0 0.0
    %249 = vmatprep.subr.mxu0 0.0
    %250 = vmatpush1.msra.mxu0 0.0
    %251 = vmatprep.subr.mxu0 0.0
    %252 = vmatpush1.msra.mxu0 0.0
    %253 = vmatprep.subr.mxu0 0.0
    %254 = vmatpush1.msra.mxu0 0.0
    %255 = vmatprep.subr.mxu0 0.0
    %256 = vmatpush1.msra.mxu0 0.0
    %257 = vmatprep.subr.mxu0 0.0
    %258 = vmatpush1.msra.mxu0 0.0
    %259 = vmatprep.subr.mxu0 0.0
    %260 = vmatpush1.msra.mxu0 0.0
    %261 = vmatprep.mubr.f32.mxu0 0.0
    %262 = vmatmul.mubr.f32.gmra.mrb[0].mxu0 %v171
    %v263 = vpop.f32.mrb[0].mxu0
    %v264 = vadd.f32 %v195, %v263
    %v265 = vpop.f32.mrb[0].mxu0
    %266 = vdwg.mxu0
    %vm267 = vcmp.gt.f32.partialorder %v264, 0.0
    %v268 = vmul.f32 %v264, 0.01
    %v269 = vsel %vm267, %v264, %v268
    %v270 = vld [vmem:[#allocation8] sm:$0xff]
    %v271 = vld [vmem:[#allocation8 + $0x8] sm:$0xff]
    %v272 = vld [vmem:[#allocation8 + $0x10] sm:$0xff]
    %v273 = vld [vmem:[#allocation8 + $0x18] sm:$0xff]
    %v274 = vld [vmem:[#allocation8 + $0x20] sm:$0xff]
    %v275 = vld [vmem:[#allocation8 + $0x28] sm:$0xff]
    %v276 = vld [vmem:[#allocation8 + $0x30] sm:$0xff]
    %v277 = vld [vmem:[#allocation8 + $0x38] sm:$0xff]
    %v278 = vld [vmem:[#allocation8 + $0x40] sm:$0xff]
    %v279 = vld [vmem:[#allocation8 + $0x48] sm:$0xff]
    %v280 = vld [vmem:[#allocation8 + $0x50] sm:$0xff]
    %v281 = vld [vmem:[#allocation8 + $0x58] sm:$0xff]
    %v282 = vld [vmem:[#allocation8 + $0x60] sm:$0xff]
    %v283 = vld [vmem:[#allocation8 + $0x68] sm:$0xff]
    %v284 = vld [vmem:[#allocation8 + $0x70] sm:$0xff]
    %v285 = vld [vmem:[#allocation8 + $0x78] sm:$0xff]
    %v286 = vld [vmem:[%s6] sm:$0x1]
    %v288 = vlaneseq
    %v289 = vshrl.u32 %v288, 7
    %v290 = vsub.s32 0, %v289
    %v291 = vrot.slane %v286, %v290
    %293 = vmatprep.subr.mxu0 0.0
    %294 = vmatpush1.msra.mxu0 %v270
    %295 = vmatprep.subr.mxu0 0.0
    %296 = vmatpush1.msra.mxu0 %v271
    %297 = vmatprep.subr.mxu0 0.0
    %298 = vmatpush1.msra.mxu0 %v272
    %299 = vmatprep.subr.mxu0 0.0
    %300 = vmatpush1.msra.mxu0 %v273
    %301 = vmatprep.subr.mxu0 0.0
    %302 = vmatpush1.msra.mxu0 %v274
    %303 = vmatprep.subr.mxu0 0.0
    %304 = vmatpush1.msra.mxu0 %v275
    %305 = vmatprep.subr.mxu0 0.0
    %306 = vmatpush1.msra.mxu0 %v276
    %307 = vmatprep.subr.mxu0 0.0
    %308 = vmatpush1.msra.mxu0 %v277
    %309 = vmatprep.subr.mxu0 0.0
    %310 = vmatpush1.msra.mxu0 %v278
    %311 = vmatprep.subr.mxu0 0.0
    %312 = vmatpush1.msra.mxu0 %v279
    %313 = vmatprep.subr.mxu0 0.0
    %314 = vmatpush1.msra.mxu0 %v280
    %315 = vmatprep.subr.mxu0 0.0
    %316 = vmatpush1.msra.mxu0 %v281
    %317 = vmatprep.subr.mxu0 0.0
    %318 = vmatpush1.msra.mxu0 %v282
    %319 = vmatprep.subr.mxu0 0.0
    %320 = vmatpush1.msra.mxu0 %v283
    %321 = vmatprep.subr.mxu0 0.0
    %322 = vmatpush1.msra.mxu0 %v284
    %323 = vmatprep.subr.mxu0 0.0
    %324 = vmatpush1.msra.mxu0 %v285
    %325 = vmatprep.subr.mxu0 0.0
    %326 = vmatpush1.msra.mxu0 0.0
    %327 = vmatprep.subr.mxu0 0.0
    %328 = vmatpush1.msra.mxu0 0.0
    %329 = vmatprep.subr.mxu0 0.0
    %330 = vmatpush1.msra.mxu0 0.0
    %331 = vmatprep.subr.mxu0 0.0
    %332 = vmatpush1.msra.mxu0 0.0
    %333 = vmatprep.subr.mxu0 0.0
    %334 = vmatpush1.msra.mxu0 0.0
    %335 = vmatprep.subr.mxu0 0.0
    %336 = vmatpush1.msra.mxu0 0.0
    %337 = vmatprep.subr.mxu0 0.0
    %338 = vmatpush1.msra.mxu0 0.0
    %339 = vmatprep.subr.mxu0 0.0
    %340 = vmatpush1.msra.mxu0 0.0
    %341 = vmatprep.subr.mxu0 0.0
    %342 = vmatpush1.msra.mxu0 0.0
    %343 = vmatprep.subr.mxu0 0.0
    %344 = vmatpush1.msra.mxu0 0.0
    %345 = vmatprep.subr.mxu0 0.0
    %346 = vmatpush1.msra.mxu0 0.0
    %347 = vmatprep.subr.mxu0 0.0
    %348 = vmatpush1.msra.mxu0 0.0
    %349 = vmatprep.subr.mxu0 0.0
    %350 = vmatpush1.msra.mxu0 0.0
    %351 = vmatprep.subr.mxu0 0.0
    %352 = vmatpush1.msra.mxu0 0.0
    %353 = vmatprep.subr.mxu0 0.0
    %354 = vmatpush1.msra.mxu0 0.0
    %355 = vmatprep.subr.mxu0 0.0
    %356 = vmatpush1.msra.mxu0 0.0
    %357 = vmatprep.mubr.f32.mxu0 0.0
    %358 = vmatmul.mubr.f32.gmra.mrb[0].mxu0 %v269
    %v359 = vpop.f32.mrb[0].mxu0
    %v360 = vadd.f32 %v291, %v359
    %v361 = vpop.f32.mrb[0].mxu0
    %362 = vdwg.mxu0
    %363 = vmax.xlane.f32.xlu0 %v360
    %v364 = vpop.xlane.xlu0 %363
    %v365 = vsub.f32 %v360, %v364
    %v366 = vmul.f32 %v365, 1.442695
    %v367 = vpow.pop %v366
    %368 = vadd.xlane.f32.xlu0 %v367
    %v369 = vpop.xlane.xlu0 %368
    %v370 = vrcp.pop %v369
    %v371 = vmul.f32 %v367, %v370
    %372 = vst [vmem:[#allocation10] sm:$0xff] %v371
    // Predicated region
    $region46: #{tpu_custom_call.1} parent=1 // pred_check
      _
    $region47: #{tpu_custom_call.1} parent=1 // pred_check_branch
      %374 = sbr.rel (0) target = $region49
    $region48: #{tpu_custom_call.1} parent=1 // pred_region
      %s376 = ssub.s32 128, 128
      %377 = vsyncadd [#allocation4], %s376
      %s379 = sshll.u32 [#allocation10], 4
      %s380 = int_to_ptr.vmem [resolvable:$true] %s379
      %382 = dma.vmem_to_hbm [thread:$0]  %s380, 128, %s7, [#allocation4]
    $region49: #{tpu_custom_call.1} parent=1 // pred_fallthru
      _
    // Predicated region
    $region50: #{tpu_custom_call.1} parent=1 // pred_check
      _
    $region51: #{tpu_custom_call.1} parent=1 // pred_check_branch
      %384 = sbr.rel (0) target = $region53
    $region52: #{tpu_custom_call.1} parent=1 // pred_region
      %385 = dma.done [#allocation4], 128
    $region53: #{tpu_custom_call.1} parent=1 // pred_fallthru
      _
    %386 = vsyncpa [#allocation3], 1
    %387 = vsyncpa [#allocation6], 1
    %388 = vsyncpa [#allocation9], 1
    %389 = vsyncpa [#allocation4], 1

</llo_original>
